<compile_context>
chip_gen: v7x
topology: tpu7x:2x2x1
jax: 0.10.0
libtpu: 0.0.40
codegen_flags: <defaults>
</compile_context>

<pallas_src>
import functools

import jax
import jax.numpy as jnp
from jax import lax
from jax.experimental import pallas as pl
from jax.experimental.pallas import tpu as pltpu

EPS = 1e-3
CHANNELS = (1, 64, 128, 64)
KERNELS = (5, 3, 2)
MXU_DTYPE = jnp.bfloat16          # MXU-native operands on v5e / v6e / v7x
VMEM_LIMIT_BYTES = 32 * 1024 * 1024
DEFAULT_TILE_N = 64               # batch rows per grid step; sweep per chip
                                  # (review: v6e ~128, v7x 64-96, v5e <=64)


def _compiler_params():
    # Batch tiles are fully independent (BN stats leave the kernel as per-tile
    # partial sums), so the N axis is "parallel" -> megacore sharding on v7x.
    return pltpu.CompilerParams(
        dimension_semantics=("parallel",),
        vmem_limit_bytes=VMEM_LIMIT_BYTES,
    )


def _write_partial_stats(stats_ref, acc):
    """Per-tile channel sums for global (whole-batch) BatchNorm statistics."""
    stats_ref[:, 0:1, :] = jnp.sum(acc, axis=(0, 1), keepdims=True)
    stats_ref[:, 1:2, :] = jnp.sum(acc * acc, axis=(0, 1), keepdims=True)


# --------------------------------- kernels ----------------------------------
def conv1_kernel(x_ref, w1_ref, h_ref, stats_ref):
    """Layer 1 (Cin=1, K=5): broadcast FMAs on the VPU (a depth-5 contraction
    would leave the MXU nearly idle).  Conv bias is dropped — it cancels in
    training-mode BatchNorm (the batch mean absorbs it)."""
    x = x_ref[...]                                   # (TN, T, 1) channels-last
    w1 = w1_ref[...]                                 # (K1, C1)
    k1 = w1.shape[0]
    l1 = x.shape[1] - k1 + 1
    acc = x[:, 0:l1, :] * w1[0]
    for k in range(1, k1):                           # static unroll, K1 = 5
        acc = acc + x[:, k:k + l1, :] * w1[k]
    h_ref[...] = acc                                 # raw conv output (pre-BN)
    _write_partial_stats(stats_ref, acc)


def conv_bn_kernel(h_ref, scale_ref, shift_ref, w_ref, out_ref, stats_ref,
                   *, k_size, n_valid, tile_n):
    """BN(prev layer, global stats) + ReLU + conv(k_size) as ONE im2col matmul."""
    h = h_ref[...]                                   # (TN, Lin, Cin) f32
    tn, l_in, cin = h.shape
    l_out = l_in - k_size + 1

    # Fused BN scale/shift (from global batch stats, computed in the wrapper).
    h = jnp.maximum(h * scale_ref[...] + shift_ref[...], 0.0)

    # Zero batch-padding rows so they contribute nothing to this layer's stats.
    if n_valid is not None:
        rows_left = n_valid - pl.program_id(0) * tile_n
        row_ids = lax.broadcasted_iota(jnp.int32, (tn, 1, 1), 0)
        h = jnp.where(row_ids < rows_left, h, 0.0)

    # Pad Lout to a sublane multiple so the (TN*Lout, K*Cin) flatten is
    # (8,128)-tile aligned -> no relayout copy around the matmul.
    l_pad = ((l_out + 7) // 8) * 8
    extra = l_pad + k_size - 1 - l_in
    if extra > 0:
        h = jnp.concatenate(
            [h, jnp.zeros((tn, extra, cin), dtype=h.dtype)], axis=1)

    # im2col: lane-concat of K shifted slices -> contraction depth K*Cin,
    # bf16 operands feed the MXU, f32 accumulation.
    cols = jnp.concatenate(
        [h[:, k:k + l_pad, :] for k in range(k_size)], axis=-1)
    cols = cols.reshape(tn * l_pad, k_size * cin).astype(MXU_DTYPE)
    acc = jnp.dot(cols, w_ref[...], preferred_element_type=jnp.float32)
    acc = acc.reshape(tn, l_pad, -1)[:, :l_out, :]   # (TN, Lout, Cout) f32

    out_ref[...] = acc                               # raw conv output (pre-BN)
    _write_partial_stats(stats_ref, acc)


def bn_pool_kernel(h_ref, scale_ref, shift_ref, out_ref):
    """Final BN + ReLU + global average pool over the remaining length."""
    h = jnp.maximum(h_ref[...] * scale_ref[...] + shift_ref[...], 0.0)
    out_ref[...] = jnp.mean(h, axis=1)               # (TN, C_out), lane = C_out


# --------------------------------- wrapper ----------------------------------
def _bn_scale_shift(stats, gamma, beta, count):
    """Fuse global-batch BN into one scale/shift (single-pass variance)."""
    s = jnp.sum(stats, axis=0)                       # (2, C): [sum, sum_sq]
    mean = s[0] / count
    var = s[1] / count - mean * mean                 # E[x^2] - E[x]^2
    scale = gamma * lax.rsqrt(var + EPS)
    shift = beta - mean * scale
    return scale[None, :], shift[None, :]            # (1, C) each


def block_fcn(x, params, *, tile_n=DEFAULT_TILE_N):
    """x: (N, 1, T) float32 (PyTorch NCL).  Returns (N, C_out, 1).
    Training-mode forward (BatchNorm uses biased batch statistics)."""
    n, cin, t = x.shape
    assert cin == CHANNELS[0] == 1
    c1, c2, c3 = CHANNELS[1:]
    k1, k2, k3 = KERNELS
    l1 = t - k1 + 1
    l2 = l1 - k2 + 1
    l3 = l2 - k3 + 1
    assert l3 >= 1

    # ---- batch tiling ----
    tile_n = n if n <= tile_n else tile_n            # >64 path keeps tile 8-aligned
    n_tiles = pl.cdiv(n, tile_n)
    n_pad = n_tiles * tile_n
    n_valid = n if n_pad != n else None              # static mask flag

    # ---- layout plumbing (outside the kernels) ----
    x_cl = jnp.transpose(x, (0, 2, 1)).astype(jnp.float32)      # (N, T, 1)
    if n_pad != n:
        x_cl = jnp.pad(x_cl, ((0, n_pad - n), (0, 0), (0, 0)))  # zero rows -> zero stats
    # im2col-ready weights (K*Cin, Cout), row index k*Cin + c.  Layers 2/3 are
    # MXU matmuls -> bf16 operands; layer 1 stays f32 on the VPU.
    w1 = jnp.transpose(params["w1"], (2, 1, 0)).reshape(k1 * 1, c1).astype(jnp.float32)
    w2 = jnp.transpose(params["w2"], (2, 1, 0)).reshape(k2 * c1, c2).astype(MXU_DTYPE)
    w3 = jnp.transpose(params["w3"], (2, 1, 0)).reshape(k3 * c2, c3).astype(MXU_DTYPE)
    gammas = [params[f"g{i}"].reshape(-1).astype(jnp.float32) for i in (1, 2, 3)]
    betas = [params[f"be{i}"].reshape(-1).astype(jnp.float32) for i in (1, 2, 3)]
    # NOTE: conv biases are intentionally NOT passed — training-mode BatchNorm's
    # batch mean absorbs them exactly (the biased f32 reference validates this).

    grid = (n_tiles,)
    cparams = _compiler_params()

    def const_spec(shape):                           # resident weights / BN params
        return pl.BlockSpec(shape, lambda *_: (0,) * len(shape))

    def act_spec(l, c):                              # batch-tiled activations
        return pl.BlockSpec((tile_n, l, c), lambda i: (i, 0, 0))

    def stats_spec(c):                               # per-tile (sum, sum_sq) rows
        return pl.BlockSpec((1, 2, c), lambda i: (i, 0, 0))

    def stats_shape(c):
        return jax.ShapeDtypeStruct((n_tiles, 2, c), jnp.float32)

    # ---- layer 1: conv only (its BN stats come out as per-tile partials) ----
    h1, st1 = pl.pallas_call(
        conv1_kernel,
        grid=grid,
        in_specs=[act_spec(t, 1), const_spec((k1, c1))],
        out_specs=(act_spec(l1, c1), stats_spec(c1)),
        out_shape=(jax.ShapeDtypeStruct((n_pad, l1, c1), jnp.float32),
                   stats_shape(c1)),
        compiler_params=cparams,
    )(x_cl, w1)
    sc1, sh1 = _bn_scale_shift(st1, gammas[0], betas[0], n * l1)

    # ---- layers 2 & 3: BN(prev, global stats) + ReLU + im2col conv ----
    def conv_bn_layer(h_prev, scale, shift, w, l_in, c_in, c_out, k_size):
        l_out = l_in - k_size + 1
        kern = functools.partial(conv_bn_kernel, k_size=k_size,
                                 n_valid=n_valid, tile_n=tile_n)
        return pl.pallas_call(
            kern,
            grid=grid,
            in_specs=[act_spec(l_in, c_in),
                      const_spec((1, c_in)), const_spec((1, c_in)),
                      const_spec((k_size * c_in, c_out))],
            out_specs=(act_spec(l_out, c_out), stats_spec(c_out)),
            out_shape=(jax.ShapeDtypeStruct((n_pad, l_out, c_out), jnp.float32),
                       stats_shape(c_out)),
            compiler_params=cparams,
        )(h_prev, scale, shift, w)

    h2, st2 = conv_bn_layer(h1, sc1, sh1, w2, l1, c1, c2, k2)
    sc2, sh2 = _bn_scale_shift(st2, gammas[1], betas[1], n * l2)
    h3, st3 = conv_bn_layer(h2, sc2, sh2, w3, l2, c2, c3, k3)
    sc3, sh3 = _bn_scale_shift(st3, gammas[2], betas[2], n * l3)

    # ---- final BN + ReLU + global average pool (AvgPool window == L3) ----
    pooled = pl.pallas_call(
        bn_pool_kernel,
        grid=grid,
        in_specs=[act_spec(l3, c3), const_spec((1, c3)), const_spec((1, c3))],
        out_specs=pl.BlockSpec((tile_n, c3), lambda i: (i, 0)),
        out_shape=jax.ShapeDtypeStruct((n_pad, c3), jnp.float32),
        compiler_params=cparams,
    )(h3, sc3, sh3)

    return pooled[:n, :, None]                       # (N, C_out, 1) PyTorch shape


# --------------------------- params & reference -----------------------------
def init_params(key, channels=CHANNELS, kernels=KERNELS):
    """Deterministic synthetic parameters (PyTorch-style uniform conv init,
    BN gamma=1 / beta=0 defaults).  Conv biases exist only for the reference."""
    params = {}
    for i, (cin, cout, k) in enumerate(zip(channels[:-1], channels[1:], kernels), start=1):
        kw, kb = jax.random.split(jax.random.fold_in(key, i))
        bound = 1.0 / (cin * k) ** 0.5
        params[f"w{i}"] = jax.random.uniform(kw, (cout, cin, k), jnp.float32, -bound, bound)
        params[f"b{i}"] = jax.random.uniform(kb, (cout, 1), jnp.float32, -bound, bound)
        params[f"g{i}"] = jnp.ones((cout, 1), jnp.float32)
        params[f"be{i}"] = jnp.zeros((cout, 1), jnp.float32)
    return params


def block_fcn_ref(x, params):
    """Pure-JAX f32 reference mirroring the PyTorch forward (conv bias kept)."""
    h = x
    for i in (1, 2, 3):
        w, b = params[f"w{i}"], params[f"b{i}"]
        g, be = params[f"g{i}"], params[f"be{i}"]
        conv = lax.conv_general_dilated(
            h, w, window_strides=(1,), padding="VALID",
            dimension_numbers=("NCH", "OIH", "NCH"))
        conv = conv + b[None, :, :]
        mean = jnp.mean(conv, axis=(0, 2), keepdims=True)
        var = jnp.mean((conv - mean) ** 2, axis=(0, 2), keepdims=True)
        h = jnp.maximum((conv - mean) * lax.rsqrt(var + EPS) * g[None, :, :]
                        + be[None, :, :], 0.0)
    return jnp.mean(h, axis=2, keepdims=True)


# ------------------------------------ main -----------------------------------
if __name__ == "__main__":
    key = jax.random.PRNGKey(0)
    kx, kp = jax.random.split(key)

    N, T = 2, 16                     # time_steps=16 -> pool window = 16 - 10 + 3 = 9
    x = jax.random.normal(kx, (N, CHANNELS[0], T), jnp.float32)   # (N, 1, T)
    params = init_params(kp)

    out = jax.block_until_ready(block_fcn(x, params))
    ref = block_fcn_ref(x, params)

    assert out.shape == (N, CHANNELS[-1], 1), out.shape
    err = float(jnp.max(jnp.abs(out - ref)))
    # bf16 MXU operands (per perf review) relax the pure-f32 tolerance; the
    # reference stays f32 and keeps the conv bias, so this also validates the
    # bias-cancellation and single-pass-variance simplifications.
    assert err < 2.5e-2, err
    print("KERNEL_OK")
</pallas_src>

<mosaic_0001>
module attributes {stable_mosaic.version = 11 : i64} {
  func.func @conv1_kernel(%arg0: i32, %arg1: memref<2x16x1xf32, #tpu.memory_space<vmem>>, %arg2: memref<5x64xf32, #tpu.memory_space<vmem>>, %arg3: memref<2x12x64xf32, #tpu.memory_space<vmem>>, %arg4: memref<1x2x64xf32, #tpu.memory_space<vmem>>) attributes {dimension_semantics = [#tpu.dimension_semantics<parallel>], iteration_bounds = array<i64: 1>, scalar_prefetch = 0 : i64, scratch_operands = 0 : i64, tpu.core_type = #tpu.core_type<tc>, window_params = [{transform_indices = @transform_0, window_bounds = array<i64: 2, 16, 1>}, {pipeline_mode = #tpu.pipeline_mode<synchronous>, transform_indices = @transform_1, window_bounds = array<i64: 5, 64>}, {transform_indices = @transform_2, window_bounds = array<i64: 2, 12, 64>}, {transform_indices = @transform_3, window_bounds = array<i64: 1, 2, 64>}]} {
    %c0 = arith.constant 0 : index
    %c0_0 = arith.constant 0 : index
    %c0_1 = arith.constant 0 : index
    %0 = vector.load %arg1[%c0, %c0_0, %c0_1] : memref<2x16x1xf32, #tpu.memory_space<vmem>>, vector<2x16x1xf32>
    %c0_2 = arith.constant 0 : index
    %c0_3 = arith.constant 0 : index
    %1 = vector.load %arg2[%c0_2, %c0_3] : memref<5x64xf32, #tpu.memory_space<vmem>>, vector<5x64xf32>
    %2 = vector.extract_strided_slice %0 {offsets = [0, 0, 0], sizes = [2, 12, 1], strides = [1, 1, 1]} : vector<2x16x1xf32> to vector<2x12x1xf32>
    %3 = vector.extract_strided_slice %1 {offsets = [0, 0], sizes = [1, 64], strides = [1, 1]} : vector<5x64xf32> to vector<1x64xf32>
    %4 = vector.shape_cast %3 : vector<1x64xf32> to vector<64xf32>
    %5 = vector.shape_cast %4 : vector<64xf32> to vector<1x1x64xf32>
    %6 = vector.broadcast %2 : vector<2x12x1xf32> to vector<2x12x64xf32>
    %7 = vector.broadcast %5 : vector<1x1x64xf32> to vector<2x12x64xf32>
    %8 = arith.mulf %6, %7 : vector<2x12x64xf32>
    %9 = vector.extract_strided_slice %0 {offsets = [0, 1, 0], sizes = [2, 12, 1], strides = [1, 1, 1]} : vector<2x16x1xf32> to vector<2x12x1xf32>
    %10 = vector.extract_strided_slice %1 {offsets = [1, 0], sizes = [1, 64], strides = [1, 1]} : vector<5x64xf32> to vector<1x64xf32>
    %11 = vector.shape_cast %10 : vector<1x64xf32> to vector<64xf32>
    %12 = vector.shape_cast %11 : vector<64xf32> to vector<1x1x64xf32>
    %13 = vector.broadcast %9 : vector<2x12x1xf32> to vector<2x12x64xf32>
    %14 = vector.broadcast %12 : vector<1x1x64xf32> to vector<2x12x64xf32>
    %15 = arith.mulf %13, %14 : vector<2x12x64xf32>
    %16 = arith.addf %8, %15 : vector<2x12x64xf32>
    %17 = vector.extract_strided_slice %0 {offsets = [0, 2, 0], sizes = [2, 12, 1], strides = [1, 1, 1]} : vector<2x16x1xf32> to vector<2x12x1xf32>
    %18 = vector.extract_strided_slice %1 {offsets = [2, 0], sizes = [1, 64], strides = [1, 1]} : vector<5x64xf32> to vector<1x64xf32>
    %19 = vector.shape_cast %18 : vector<1x64xf32> to vector<64xf32>
    %20 = vector.shape_cast %19 : vector<64xf32> to vector<1x1x64xf32>
    %21 = vector.broadcast %17 : vector<2x12x1xf32> to vector<2x12x64xf32>
    %22 = vector.broadcast %20 : vector<1x1x64xf32> to vector<2x12x64xf32>
    %23 = arith.mulf %21, %22 : vector<2x12x64xf32>
    %24 = arith.addf %16, %23 : vector<2x12x64xf32>
    %25 = vector.extract_strided_slice %0 {offsets = [0, 3, 0], sizes = [2, 12, 1], strides = [1, 1, 1]} : vector<2x16x1xf32> to vector<2x12x1xf32>
    %26 = vector.extract_strided_slice %1 {offsets = [3, 0], sizes = [1, 64], strides = [1, 1]} : vector<5x64xf32> to vector<1x64xf32>
    %27 = vector.shape_cast %26 : vector<1x64xf32> to vector<64xf32>
    %28 = vector.shape_cast %27 : vector<64xf32> to vector<1x1x64xf32>
    %29 = vector.broadcast %25 : vector<2x12x1xf32> to vector<2x12x64xf32>
    %30 = vector.broadcast %28 : vector<1x1x64xf32> to vector<2x12x64xf32>
    %31 = arith.mulf %29, %30 : vector<2x12x64xf32>
    %32 = arith.addf %24, %31 : vector<2x12x64xf32>
    %33 = vector.extract_strided_slice %0 {offsets = [0, 4, 0], sizes = [2, 12, 1], strides = [1, 1, 1]} : vector<2x16x1xf32> to vector<2x12x1xf32>
    %34 = vector.extract_strided_slice %1 {offsets = [4, 0], sizes = [1, 64], strides = [1, 1]} : vector<5x64xf32> to vector<1x64xf32>
    %35 = vector.shape_cast %34 : vector<1x64xf32> to vector<64xf32>
    %36 = vector.shape_cast %35 : vector<64xf32> to vector<1x1x64xf32>
    %37 = vector.broadcast %33 : vector<2x12x1xf32> to vector<2x12x64xf32>
    %38 = vector.broadcast %36 : vector<1x1x64xf32> to vector<2x12x64xf32>
    %39 = arith.mulf %37, %38 : vector<2x12x64xf32>
    %40 = arith.addf %32, %39 : vector<2x12x64xf32>
    %c0_4 = arith.constant 0 : index
    %c0_5 = arith.constant 0 : index
    %c0_6 = arith.constant 0 : index
    %41 = vector.load %arg3[%c0_4, %c0_5, %c0_6] : memref<2x12x64xf32, #tpu.memory_space<vmem>>, vector<2x12x64xf32>
    tpu.vector_store %arg3[%c0_4, %c0_5, %c0_6], %40 {strides = array<i32>} : memref<2x12x64xf32, #tpu.memory_space<vmem>>, vector<2x12x64xf32>,
    %cst = arith.constant dense<0.000000e+00> : vector<64xf32>
    %42 = vector.multi_reduction <add>, %40, %cst [0, 1] : vector<2x12x64xf32> to vector<64xf32>
    %43 = vector.shape_cast %42 : vector<64xf32> to vector<1x1x64xf32>
    %c0_7 = arith.constant 0 : index
    %c0_8 = arith.constant 0 : index
    %c0_9 = arith.constant 0 : index
    %44 = vector.load %arg4[%c0_7, %c0_8, %c0_9] : memref<1x2x64xf32, #tpu.memory_space<vmem>>, vector<1x1x64xf32>
    tpu.vector_store %arg4[%c0_7, %c0_8, %c0_9], %43 {strides = array<i32>} : memref<1x2x64xf32, #tpu.memory_space<vmem>>, vector<1x1x64xf32>,
    %45 = arith.mulf %40, %40 : vector<2x12x64xf32>
    %cst_10 = arith.constant dense<0.000000e+00> : vector<64xf32>
    %46 = vector.multi_reduction <add>, %45, %cst_10 [0, 1] : vector<2x12x64xf32> to vector<64xf32>
    %47 = vector.shape_cast %46 : vector<64xf32> to vector<1x1x64xf32>
    %c0_11 = arith.constant 0 : index
    %c1 = arith.constant 1 : index
    %c0_12 = arith.constant 0 : index
    %48 = vector.load %arg4[%c0_11, %c1, %c0_12] : memref<1x2x64xf32, #tpu.memory_space<vmem>>, vector<1x1x64xf32>
    tpu.vector_store %arg4[%c0_11, %c1, %c0_12], %47 {strides = array<i32>} : memref<1x2x64xf32, #tpu.memory_space<vmem>>, vector<1x1x64xf32>,
    return
  }
  func.func @transform_0(%arg0: i32) -> (i32, i32, i32) {
    %c0_i32 = arith.constant 0 : i32
    %c0_i32_0 = arith.constant 0 : i32
    %c0_i32_1 = arith.constant 0 : i32
    return %arg0, %c0_i32, %c0_i32_0 : i32, i32, i32
  }
  func.func @transform_1(%arg0: i32) -> (i32, i32) {
    %c0_i32 = arith.constant 0 : i32
    %c0_i32_0 = arith.constant 0 : i32
    %c0_i32_1 = arith.constant 0 : i32
    return %c0_i32, %c0_i32_0 : i32, i32
  }
  func.func @transform_2(%arg0: i32) -> (i32, i32, i32) {
    %c0_i32 = arith.constant 0 : i32
    %c0_i32_0 = arith.constant 0 : i32
    %c0_i32_1 = arith.constant 0 : i32
    return %arg0, %c0_i32, %c0_i32_0 : i32, i32, i32
  }
  func.func @transform_3(%arg0: i32) -> (i32, i32, i32) {
    %c0_i32 = arith.constant 0 : i32
    %c0_i32_0 = arith.constant 0 : i32
    %c0_i32_1 = arith.constant 0 : i32
    return %arg0, %c0_i32, %c0_i32_0 : i32, i32, i32
  }
}

</mosaic_0001>

<llo_original>
// kernel: tpu_custom_call.1
$region0: #{tpu_custom_call.1}
  #allocation0 [shape = 'u32[]', space=smem, size = 0x4, offset = 0x4, fixed_abs, tag = 'smem constant byte address 0x4 - core index']
  #allocation1 [shape = 'u32[144,128]{1,0:T(1,128)}', space=vmem, size = 0x12000, scoped, tag = 'internal scratch']
  %s0 = inlined_call_operand.vmem [shape: f32[2,16,1], index: 0, kind: input, shape index: {}]
  %s1 = inlined_call_operand.vmem [shape: f32[5,64], index: 1, kind: input, shape index: {}]
  %s2 = inlined_call_operand.vmem [shape: f32[2,12,64], index: 2, kind: output, shape index: {0}]
  %s3 = inlined_call_operand.hbm [shape: f32[1,2,64], index: 3, kind: output, shape index: {1}]
  %4 = xla_tuple %s2, %s3
  %s5 = sld [smem:[#allocation0]]
  $region26: #{tpu_custom_call.1} parent=0
    _
  %s7 = ssub.s32 1, %s5
  %s8 = scalar_select 0, %s7, %s5
  $region1: #{tpu_custom_call.1} parent=0
    #allocation2 [shape = 'u8[1024]{0}', space=vmem, size = 0x400, scoped, tag = 'output window, operand 1, single buffered']
    #allocation3 [shape = 's32[1]{0}', space=sflag, size = 0x4, scoped, tag = 'scoped memory for tpu_custom_call.1']
    %9 = vsyncpa [#allocation3], 0
    // Predicated region
    $region2: #{tpu_custom_call.1} parent=1 // pred_check
      _
    $region3: #{tpu_custom_call.1} parent=1 // pred_check_branch
      %11 = sbr.rel (0) target = $region5
    $region4: #{tpu_custom_call.1} parent=1 // pred_region
      _
    $region5: #{tpu_custom_call.1} parent=1 // pred_fallthru
      _
    // Predicated region
    $region6: #{tpu_custom_call.1} parent=1 // pred_check
      _
    $region7: #{tpu_custom_call.1} parent=1 // pred_check_branch
      %13 = sbr.rel (0) target = $region9
    $region8: #{tpu_custom_call.1} parent=1 // pred_region
      _
    $region9: #{tpu_custom_call.1} parent=1 // pred_fallthru
      _
    %v14 = vld [vmem:[%s0] sm:$0xff]
    %v15 = vld [vmem:[%s0 + $0x8] sm:$0xff]
    %v16 = vld [vmem:[%s0 + $0x10] sm:$0xff]
    %v17 = vld [vmem:[%s0 + $0x18] sm:$0xff]
    %v18 = vld [vmem:[%s1] sm:$0x1f]
    %20 = vset.pattern.permute.xlu0 0
    %21 = vperm.xlu0 %20, %v14
    %v22 = vpop.permute.xlu0 %21
    %25 = vset.pattern.permute.xlu0 0
    %26 = vperm.xlu0 %25, %v15
    %v27 = vpop.permute.xlu0 %26
    %30 = vset.pattern.permute.xlu0 0
    %31 = vperm.xlu0 %30, %v16
    %v32 = vpop.permute.xlu0 %31
    %35 = vset.pattern.permute.xlu0 0
    %36 = vperm.xlu0 %35, %v17
    %v37 = vpop.permute.xlu0 %36
    %v39 = vlaneseq
    %v40 = vshrl.u32 %v39, 7
    %v41 = vsub.s32 0, %v40
    %v42 = vrot.slane %v18, %v41
    %v43 = vmul.f32 %v22, %v42
    %v44 = vmul.f32 %v27, %v42
    %v45 = vmul.f32 %v32, %v42
    %v46 = vmul.f32 %v37, %v42
    %v47 = vlaneseq
    %v48 = vshrl.u32 %v47, 7
    %v49 = vsub.s32 1, %v48
    %v50 = vrot.slane %v18, %v49
    %v51 = vmul.f32 %v22, %v50
    %v52 = vmul.f32 %v27, %v50
    %v53 = vmul.f32 %v32, %v50
    %v54 = vmul.f32 %v37, %v50
    %vm59 = vcmask 1046528
    %v60 = vrot.slane %v51, 1
    %v61 = vrot.slane %v52, 1
    %v62 = vsel %vm59, %v60, %v61
    %v63 = vrot.slane %v53, 1
    %v64 = vrot.slane %v54, 1
    %v65 = vsel %vm59, %v63, %v64
    %v70 = vadd.f32 %v43, %v62
    %v71 = vadd.f32 %v44, %v61
    %v72 = vadd.f32 %v45, %v65
    %v73 = vadd.f32 %v46, %v64
    %v74 = vlaneseq
    %v75 = vshrl.u32 %v74, 7
    %v76 = vsub.s32 2, %v75
    %v77 = vrot.slane %v18, %v76
    %v78 = vmul.f32 %v22, %v77
    %v79 = vmul.f32 %v27, %v77
    %v80 = vmul.f32 %v32, %v77
    %v81 = vmul.f32 %v37, %v77
    %vm86 = vcmask 1045504
    %v87 = vrot.slane %v78, 2
    %v88 = vrot.slane %v79, 2
    %v89 = vsel %vm86, %v87, %v88
    %v90 = vrot.slane %v80, 2
    %v91 = vrot.slane %v81, 2
    %v92 = vsel %vm86, %v90, %v91
    %v97 = vadd.f32 %v70, %v89
    %v98 = vadd.f32 %v71, %v88
    %v99 = vadd.f32 %v72, %v92
    %v100 = vadd.f32 %v73, %v91
    %v101 = vlaneseq
    %v102 = vshrl.u32 %v101, 7
    %v103 = vsub.s32 3, %v102
    %v104 = vrot.slane %v18, %v103
    %v105 = vmul.f32 %v22, %v104
    %v106 = vmul.f32 %v27, %v104
    %v107 = vmul.f32 %v32, %v104
    %v108 = vmul.f32 %v37, %v104
    %vm113 = vcmask 1044480
    %v114 = vrot.slane %v105, 3
    %v115 = vrot.slane %v106, 3
    %v116 = vsel %vm113, %v114, %v115
    %v117 = vrot.slane %v107, 3
    %v118 = vrot.slane %v108, 3
    %v119 = vsel %vm113, %v117, %v118
    %v124 = vadd.f32 %v97, %v116
    %v125 = vadd.f32 %v98, %v115
    %v126 = vadd.f32 %v99, %v119
    %v127 = vadd.f32 %v100, %v118
    %v128 = vlaneseq
    %v129 = vshrl.u32 %v128, 7
    %v130 = vsub.s32 4, %v129
    %v131 = vrot.slane %v18, %v130
    %v132 = vmul.f32 %v22, %v131
    %v133 = vmul.f32 %v27, %v131
    %v134 = vmul.f32 %v32, %v131
    %v135 = vmul.f32 %v37, %v131
    %vm140 = vcmask 1043456
    %v141 = vrot.slane %v132, 4
    %v142 = vrot.slane %v133, 4
    %v143 = vsel %vm140, %v141, %v142
    %v144 = vrot.slane %v134, 4
    %v145 = vrot.slane %v135, 4
    %v146 = vsel %vm140, %v144, %v145
    %v151 = vadd.f32 %v124, %v143
    %v152 = vadd.f32 %v125, %v142
    %v153 = vadd.f32 %v126, %v146
    %v154 = vadd.f32 %v127, %v145
    %vm155 = vcmask 523264
    %156 = vst.msk [vmem:[%s2] sm:$0xff] %vm155, %v151
    %vm157 = vcmask 519168
    %158 = vst.msk [vmem:[%s2 + $0x8] sm:$0xf] %vm157, %v152
    %159 = vst.msk [vmem:[%s2 + $0x10] sm:$0xff] %vm155, %v153
    %160 = vst.msk [vmem:[%s2 + $0x18] sm:$0xf] %vm157, %v154
    %v161 = vsel %vm155, %v151, 0.0
    %v162 = vsel %vm157, %v152, 0.0
    %v163 = vadd.f32 %v161, %v162
    %v164 = vsel %vm155, %v153, 0.0
    %v165 = vadd.f32 %v163, %v164
    %v166 = vsel %vm157, %v154, 0.0
    %v167 = vadd.f32 %v165, %v166
    %v168 = vrot.slane %v167, 4
    %v169 = vadd.f32 %v167, %v168
    %v170 = vrot.slane %v169, 2
    %v171 = vadd.f32 %v169, %v170
    %v172 = vrot.slane %v171, 1
    %v173 = vadd.f32 %v171, %v172
    %vm174 = vcmask 516096
    %175 = vst.msk [vmem:[#allocation2] sm:$0x1] %vm174, %v173
    %v176 = vmul.f32 %v151, %v151
    %v177 = vmul.f32 %v152, %v152
    %v178 = vmul.f32 %v153, %v153
    %v179 = vmul.f32 %v154, %v154
    %v180 = vsel %vm155, %v176, 0.0
    %v181 = vsel %vm157, %v177, 0.0
    %v182 = vadd.f32 %v180, %v181
    %v183 = vsel %vm155, %v178, 0.0
    %v184 = vadd.f32 %v182, %v183
    %v185 = vsel %vm157, %v179, 0.0
    %v186 = vadd.f32 %v184, %v185
    %v187 = vrot.slane %v186, 4
    %v188 = vadd.f32 %v186, %v187
    %v189 = vrot.slane %v188, 2
    %v190 = vadd.f32 %v188, %v189
    %v191 = vrot.slane %v190, 1
    %v192 = vadd.f32 %v190, %v191
    %193 = vst.msk [vmem:[#allocation2 + $0x1] sm:$0x1] %vm174, %v192
    // Predicated region
    $region10: #{tpu_custom_call.1} parent=1 // pred_check
      _
    $region11: #{tpu_custom_call.1} parent=1 // pred_check_branch
      %195 = sbr.rel (0) target = $region13
    $region12: #{tpu_custom_call.1} parent=1 // pred_region
      _
    $region13: #{tpu_custom_call.1} parent=1 // pred_fallthru
      _
    // Predicated region
    $region14: #{tpu_custom_call.1} parent=1 // pred_check
      _
    $region15: #{tpu_custom_call.1} parent=1 // pred_check_branch
      %197 = sbr.rel (0) target = $region17
    $region16: #{tpu_custom_call.1} parent=1 // pred_region
      %s199 = ssub.s32 32, 32
      %200 = vsyncadd [#allocation3], %s199
      %s202 = sshll.u32 [#allocation2], 4
      %s203 = int_to_ptr.vmem [resolvable:$true] %s202
      %205 = dma.vmem_to_hbm [thread:$0]  %s203, 32, %s3, [#allocation3]
    $region17: #{tpu_custom_call.1} parent=1 // pred_fallthru
      _
    // Predicated region
    $region18: #{tpu_custom_call.1} parent=1 // pred_check
      _
    $region19: #{tpu_custom_call.1} parent=1 // pred_check_branch
      %207 = sbr.rel (0) target = $region21
    $region20: #{tpu_custom_call.1} parent=1 // pred_region
      _
    $region21: #{tpu_custom_call.1} parent=1 // pred_fallthru
      _
    // Predicated region
    $region22: #{tpu_custom_call.1} parent=1 // pred_check
      _
    $region23: #{tpu_custom_call.1} parent=1 // pred_check_branch
      %209 = sbr.rel (0) target = $region25
    $region24: #{tpu_custom_call.1} parent=1 // pred_region
      %210 = dma.done [#allocation3], 32
    $region25: #{tpu_custom_call.1} parent=1 // pred_fallthru
      _
    %211 = vsyncpa [#allocation3], 1

</llo_original>
